<compile_context>
chip_gen: v6e
topology: v6e:2x2x1
jax: 0.10.0
libtpu: 0.0.40
codegen_flags: <defaults>
</compile_context>

<pallas_src>
import jax
import jax.numpy as jnp
from jax.experimental import pallas as pl
from jax.experimental.pallas import tpu as pltpu

_LANES = 128


def _round_up(a, b):
    return ((a + b - 1) // b) * b


# ----------------------------------------------------------------------------
# Kernel factory: fused elementwise + per-(sublane,lane) reduction.
# Output block: (1, num_map, 4, 8, 128) with planes
#   0 = sum(BCE terms), 1 = sum(sigmoid(x)), 2 = sum(sigmoid(x) * y), 3 = sum(y)
# (planes 1/2 stay zero for the edge map, which only needs BCE).
# ----------------------------------------------------------------------------
def _make_dbce_kernel(num_map, n_valid, tr, tiles_per_split):
    edge_idx = num_map - 2  # this map is scored against target_edge

    def kernel(*refs):
        pred_refs = refs[:num_map]
        tgt_ref = refs[num_map]
        tgt_edge_ref = refs[num_map + 1]
        out_ref = refs[num_map + 2]

        c = pl.program_id(0)          # core-split axis (v7x megacore)
        r = pl.program_id(1)          # row-tile axis

        @pl.when(r == 0)
        def _init():
            out_ref[...] = jnp.zeros_like(out_ref)

        # Validity mask for the ragged tail, partial last block and any
        # overhanging grid positions (replaces wrapper zero-padding copies).
        row0 = (c * tiles_per_split + r) * tr
        row_iota = jax.lax.broadcasted_iota(jnp.int32, (tr, _LANES), 0)
        lane_iota = jax.lax.broadcasted_iota(jnp.int32, (tr, _LANES), 1)
        valid = (row0 + row_iota) * _LANES + lane_iota < n_valid

        def tile_sum(v):              # (tr, 128) f32 -> (8, 128), vreg-wise adds
            return jnp.sum(v.reshape(tr // 8, 8, _LANES), axis=0)

        y = jnp.where(valid, tgt_ref[...].astype(jnp.float32), 0.0)
        y_edge = jnp.where(valid, tgt_edge_ref[...].astype(jnp.float32), 0.0)

        for i in range(num_map):
            is_edge = num_map >= 2 and i == edge_idx
            yi = y_edge if is_edge else y
            x = pred_refs[i][...].astype(jnp.float32)

            # One exp per element, shared by stable BCE and stable sigmoid.
            e = jnp.exp(-jnp.abs(x))
            bce = jnp.maximum(x, 0.0) - x * yi + jnp.log1p(e)
            out_ref[0, i, 0] += tile_sum(jnp.where(valid, bce, 0.0))
            out_ref[0, i, 3] += tile_sum(yi)
            if not is_edge:           # edge map only needs BCE, skip dice terms
                p = jnp.where(x >= 0.0, 1.0, e) / (1.0 + e)
                p = jnp.where(valid, p, 0.0)
                out_ref[0, i, 1] += tile_sum(p)
                out_ref[0, i, 2] += tile_sum(p * yi)

    return kernel


# ----------------------------------------------------------------------------
# DBCE forward (matches the PyTorch module semantics).
# ----------------------------------------------------------------------------
def dbce_forward(pred_list, target, target_edge, W_s=1, W_b=5, W_f=2,
                 tile_rows=2048):
    num_map = len(pred_list)
    n = int(target.size)
    assert int(target_edge.size) == n
    assert all(int(p.size) == n for p in pred_list)

    # 2-D (rows, 128) views.  Common case (n % 128 == 0, n >= 1024) is a free
    # reshape with zero HBM copies; otherwise only a tiny tail pad materializes.
    padded = max(_round_up(n, _LANES), 8 * _LANES)
    rows = padded // _LANES

    def as_2d(a):
        flat = a.reshape(-1)
        if padded != n:
            flat = jnp.pad(flat, (0, padded - n))
        return flat.reshape(rows, _LANES)

    preds2d = [as_2d(p) for p in pred_list]
    inputs = preds2d + [as_2d(target), as_2d(target_edge)]

    # Row-tile size: ~1 MiB blocks hit >=85% of HBM roofline; cap so that the
    # double-buffered inputs stay within ~24 MiB of VMEM on every generation.
    row_bytes_2buf = 2 * _LANES * sum(a.dtype.itemsize for a in inputs)
    tr_cap = max(8, ((24 << 20) // row_bytes_2buf) // 8 * 8)
    tr = max(8, (min(tile_rows, rows, tr_cap) // 8) * 8)

    total_tiles = -(-rows // tr)
    split = 2 if total_tiles >= 2 else 1        # feed both v7x TensorCores
    tiles_per_split = -(-total_tiles // split)

    def data_map(c, r):
        # Clamp so an overhanging position of an uneven split re-reads the last
        # tile; its contribution is fully masked out in-kernel.
        return (jnp.minimum(c * tiles_per_split + r, total_tiles - 1), 0)

    out_block_bytes = num_map * 4 * 8 * _LANES * 4
    vmem_limit = min(tr * row_bytes_2buf + 4 * out_block_bytes + (8 << 20),
                     56 << 20)

    kernel = _make_dbce_kernel(num_map, n, tr, tiles_per_split)
    non_edge = num_map - (1 if num_map >= 2 else 0)

    sums = pl.pallas_call(
        kernel,
        out_shape=jax.ShapeDtypeStruct((split, num_map, 4, 8, _LANES),
                                       jnp.float32),
        grid_spec=pltpu.PrefetchScalarGridSpec(
            num_scalar_prefetch=0,
            grid=(split, tiles_per_split),
            in_specs=[pl.BlockSpec((tr, _LANES), data_map)
                      for _ in range(num_map + 2)],
            out_specs=pl.BlockSpec((1, num_map, 4, 8, _LANES),
                                   lambda c, r: (c, 0, 0, 0, 0)),
        ),
        compiler_params=pltpu.CompilerParams(
            dimension_semantics=("parallel", "arbitrary"),
            vmem_limit_bytes=int(vmem_limit),
        ),
        cost_estimate=pl.CostEstimate(
            flops=int(12 * num_map * rows * _LANES),
            transcendentals=int((2 * num_map + non_edge) * rows * _LANES),
            bytes_accessed=int(sum(a.size * a.dtype.itemsize for a in inputs)
                               + split * num_map * 4 * 8 * _LANES * 4),
        ),
    )(*inputs)

    # Tiny final reductions in JAX: (split, M, 4, 8, 128) -> (M, 4).
    stats = jnp.sum(sums, axis=(0, 3, 4))
    bce = stats[:, 0] / jnp.float32(n)                            # mean reduction
    p_sum, inter, t_sum = stats[:, 1], stats[:, 2], stats[:, 3]
    dice = 1.0 - (2.0 * inter + 1.0) / (p_sum + t_sum + 1.0)      # smooth = 1

    spec_map_loss = jnp.float32(0.0)
    for i in range(num_map - 2):
        spec_map_loss = spec_map_loss + W_s * (bce[i] + dice[i])
    edge_loss = W_b * bce[num_map - 2] if num_map >= 2 else jnp.float32(0.0)
    final_loss = W_f * (bce[num_map - 1] + dice[num_map - 1])
    return spec_map_loss, edge_loss, final_loss


# ----------------------------------------------------------------------------
# Pure-JAX reference for verification.
# ----------------------------------------------------------------------------
def _ref_bce(x, y):
    x = x.astype(jnp.float32)
    y = y.astype(jnp.float32)
    return jnp.mean(jnp.maximum(x, 0.0) - x * y + jnp.log1p(jnp.exp(-jnp.abs(x))))


def _ref_dice(x, y):
    p = jax.nn.sigmoid(x.astype(jnp.float32)).reshape(-1)
    t = y.astype(jnp.float32).reshape(-1)
    inter = jnp.sum(p * t)
    return 1.0 - (2.0 * inter + 1.0) / (jnp.sum(p) + jnp.sum(t) + 1.0)


def dbce_reference(pred_list, target, target_edge, W_s=1, W_b=5, W_f=2):
    num_map = len(pred_list)
    spec, edge, fin = jnp.float32(0.0), jnp.float32(0.0), jnp.float32(0.0)
    for i in range(num_map):
        if i < num_map - 2:
            spec = spec + W_s * (_ref_bce(pred_list[i], target)
                                 + _ref_dice(pred_list[i], target))
        elif i == num_map - 2:
            edge = W_b * _ref_bce(pred_list[i], target_edge)
        else:
            fin = W_f * (_ref_bce(pred_list[i], target)
                         + _ref_dice(pred_list[i], target))
    return spec, edge, fin


def _run_case(key, shape, num_map, tile_rows):
    keys = jax.random.split(key, num_map + 2)
    pred_list = [jax.random.normal(keys[i], shape, dtype=jnp.float32)
                 for i in range(num_map)]
    target = (jax.random.uniform(keys[num_map], shape) > 0.5).astype(jnp.float32)
    target_edge = (jax.random.uniform(keys[num_map + 1], shape) > 0.8).astype(jnp.float32)

    got = dbce_forward(pred_list, target, target_edge, tile_rows=tile_rows)
    jax.block_until_ready(got)
    want = dbce_reference(pred_list, target, target_edge)
    for g, w in zip(got, want):
        assert jnp.allclose(g, w, rtol=1e-5, atol=1e-5), (shape, num_map, g, w)


if __name__ == "__main__":
    key = jax.random.PRNGKey(0)
    k1, k2 = jax.random.split(key)

    # Case 1: small NCHW maps (2*1*16*16 = 512 elems), 4 prediction maps,
    # single tile + in-kernel tail masking.
    _run_case(k1, (2, 1, 16, 16), num_map=4, tile_rows=2048)

    # Case 2: multi-tile path — 2*3*16*32 = 3072 elems (24 rows), tiny tile_rows
    # forces 3 row tiles split across the 2-way "parallel" axis (exercises the
    # clamped overhang position, partial accumulation and wrapper reduction).
    _run_case(k2, (2, 3, 16, 32), num_map=3, tile_rows=8)

    print("KERNEL_OK")
</pallas_src>

<mosaic_0001>
module attributes {stable_mosaic.version = 11 : i64} {
  func.func @kernel(%arg0: i32, %arg1: i32, %arg2: memref<8x128xf32, #tpu.memory_space<vmem>>, %arg3: memref<8x128xf32, #tpu.memory_space<vmem>>, %arg4: memref<8x128xf32, #tpu.memory_space<vmem>>, %arg5: memref<8x128xf32, #tpu.memory_space<vmem>>, %arg6: memref<8x128xf32, #tpu.memory_space<vmem>>, %arg7: memref<8x128xf32, #tpu.memory_space<vmem>>, %arg8: memref<1x4x4x8x128xf32, #tpu.memory_space<vmem>>) attributes {dimension_semantics = [#tpu.dimension_semantics<parallel>, #tpu.dimension_semantics<arbitrary>], iteration_bounds = array<i64: 1, 1>, scalar_prefetch = 0 : i64, scratch_operands = 0 : i64, tpu.core_type = #tpu.core_type<tc>, window_params = [{transform_indices = @transform_0, window_bounds = array<i64: 8, 128>}, {transform_indices = @transform_1, window_bounds = array<i64: 8, 128>}, {transform_indices = @transform_2, window_bounds = array<i64: 8, 128>}, {transform_indices = @transform_3, window_bounds = array<i64: 8, 128>}, {transform_indices = @transform_4, window_bounds = array<i64: 8, 128>}, {transform_indices = @transform_5, window_bounds = array<i64: 8, 128>}, {transform_indices = @transform_6, window_bounds = array<i64: 1, 4, 4, 8, 128>}]} {
    %c0_i32 = arith.constant 0 : i32
    %0 = arith.cmpi eq, %arg1, %c0_i32 : i32
    %1 = arith.extui %0 : i1 to i32
    %c0_i32_0 = arith.constant 0 : i32
    %2 = arith.cmpi ne, %1, %c0_i32_0 : i32
    scf.if %2 {
      %cst_188 = arith.constant 0.000000e+00 : f32
      %215 = vector.broadcast %cst_188 : f32 to vector<1x4x4x8x128xf32>
      %c0_189 = arith.constant 0 : index
      %c0_190 = arith.constant 0 : index
      %c0_191 = arith.constant 0 : index
      %c0_192 = arith.constant 0 : index
      %c0_193 = arith.constant 0 : index
      %216 = vector.load %arg8[%c0_189, %c0_190, %c0_191, %c0_192, %c0_193] : memref<1x4x4x8x128xf32, #tpu.memory_space<vmem>>, vector<1x4x4x8x128xf32>
      tpu.vector_store %arg8[%c0_189, %c0_190, %c0_191, %c0_192, %c0_193], %215 {strides = array<i32>} : memref<1x4x4x8x128xf32, #tpu.memory_space<vmem>>, vector<1x4x4x8x128xf32>,
    } else {
    }
    %c1_i32 = arith.constant 1 : i32
    %3 = arith.muli %arg0, %c1_i32 : i32
    %4 = arith.addi %3, %arg1 : i32
    %c8_i32 = arith.constant 8 : i32
    %5 = arith.muli %4, %c8_i32 : i32
    %6 = tpu.iota {dimensions = array<i32: 0>} : vector<8x128xi32>
    %7 = tpu.iota {dimensions = array<i32: 1>} : vector<8x128xi32>
    %8 = vector.broadcast %5 : i32 to vector<8x128xi32>
    %9 = arith.addi %8, %6 : vector<8x128xi32>
    %c128_i32 = arith.constant 128 : i32
    %10 = vector.broadcast %c128_i32 : i32 to vector<8x128xi32>
    %11 = arith.muli %9, %10 : vector<8x128xi32>
    %12 = arith.addi %11, %7 : vector<8x128xi32>
    %c512_i32 = arith.constant 512 : i32
    %13 = vector.broadcast %c512_i32 : i32 to vector<8x128xi32>
    %14 = arith.cmpi slt, %12, %13 : vector<8x128xi32>
    %c0 = arith.constant 0 : index
    %c0_1 = arith.constant 0 : index
    %15 = vector.load %arg6[%c0, %c0_1] : memref<8x128xf32, #tpu.memory_space<vmem>>, vector<8x128xf32>
    %cst = arith.constant 0.000000e+00 : f32
    %16 = vector.broadcast %cst : f32 to vector<8x128xf32>
    %17 = arith.select %14, %15, %16 : vector<8x128xi1>, vector<8x128xf32>
    %c0_2 = arith.constant 0 : index
    %c0_3 = arith.constant 0 : index
    %18 = vector.load %arg7[%c0_2, %c0_3] : memref<8x128xf32, #tpu.memory_space<vmem>>, vector<8x128xf32>
    %cst_4 = arith.constant 0.000000e+00 : f32
    %19 = vector.broadcast %cst_4 : f32 to vector<8x128xf32>
    %20 = arith.select %14, %18, %19 : vector<8x128xi1>, vector<8x128xf32>
    %c0_5 = arith.constant 0 : index
    %c0_6 = arith.constant 0 : index
    %21 = vector.load %arg2[%c0_5, %c0_6] : memref<8x128xf32, #tpu.memory_space<vmem>>, vector<8x128xf32>
    %22 = math.absf %21 : vector<8x128xf32>
    %cst_7 = arith.constant 0.000000e+00 : f32
    %23 = vector.broadcast %cst_7 : f32 to vector<8x128xf32>
    %24 = arith.subf %23, %22 : vector<8x128xf32>
    %25 = math.exp %24 : vector<8x128xf32>
    %cst_8 = arith.constant 0.000000e+00 : f32
    %26 = vector.broadcast %cst_8 : f32 to vector<8x128xf32>
    %27 = arith.maximumf %21, %26 : vector<8x128xf32>
    %28 = arith.mulf %21, %17 : vector<8x128xf32>
    %29 = arith.subf %27, %28 : vector<8x128xf32>
    %30 = math.log1p %25 : vector<8x128xf32>
    %31 = arith.addf %29, %30 : vector<8x128xf32>
    %c0_9 = arith.constant 0 : index
    %c0_10 = arith.constant 0 : index
    %c0_11 = arith.constant 0 : index
    %c0_12 = arith.constant 0 : index
    %c0_13 = arith.constant 0 : index
    %32 = vector.load %arg8[%c0_9, %c0_10, %c0_11, %c0_12, %c0_13] : memref<1x4x4x8x128xf32, #tpu.memory_space<vmem>>, vector<1x1x1x8x128xf32>
    %33 = vector.shape_cast %32 : vector<1x1x1x8x128xf32> to vector<8x128xf32>
    %cst_14 = arith.constant 0.000000e+00 : f32
    %34 = vector.broadcast %cst_14 : f32 to vector<8x128xf32>
    %35 = arith.select %14, %31, %34 : vector<8x128xi1>, vector<8x128xf32>
    %36 = vector.shape_cast %35 : vector<8x128xf32> to vector<1x8x128xf32>
    %cst_15 = arith.constant dense<0.000000e+00> : vector<8x128xf32>
    %37 = vector.multi_reduction <add>, %36, %cst_15 [0] : vector<1x8x128xf32> to vector<8x128xf32>
    %38 = arith.addf %33, %37 : vector<8x128xf32>
    %c0_16 = arith.constant 0 : index
    %c0_17 = arith.constant 0 : index
    %c0_18 = arith.constant 0 : index
    %c0_19 = arith.constant 0 : index
    %c0_20 = arith.constant 0 : index
    %39 = vector.load %arg8[%c0_16, %c0_17, %c0_18, %c0_19, %c0_20] : memref<1x4x4x8x128xf32, #tpu.memory_space<vmem>>, vector<1x1x1x8x128xf32>
    %40 = vector.shape_cast %39 : vector<1x1x1x8x128xf32> to vector<8x128xf32>
    %41 = vector.shape_cast %38 : vector<8x128xf32> to vector<1x1x1x8x128xf32>
    tpu.vector_store %arg8[%c0_16, %c0_17, %c0_18, %c0_19, %c0_20], %41 {strides = array<i32>} : memref<1x4x4x8x128xf32, #tpu.memory_space<vmem>>, vector<1x1x1x8x128xf32>,
    %c0_21 = arith.constant 0 : index
    %c0_22 = arith.constant 0 : index
    %c3 = arith.constant 3 : index
    %c0_23 = arith.constant 0 : index
    %c0_24 = arith.constant 0 : index
    %42 = vector.load %arg8[%c0_21, %c0_22, %c3, %c0_23, %c0_24] : memref<1x4x4x8x128xf32, #tpu.memory_space<vmem>>, vector<1x1x1x8x128xf32>
    %43 = vector.shape_cast %42 : vector<1x1x1x8x128xf32> to vector<8x128xf32>
    %44 = vector.shape_cast %17 : vector<8x128xf32> to vector<1x8x128xf32>
    %cst_25 = arith.constant dense<0.000000e+00> : vector<8x128xf32>
    %45 = vector.multi_reduction <add>, %44, %cst_25 [0] : vector<1x8x128xf32> to vector<8x128xf32>
    %46 = arith.addf %43, %45 : vector<8x128xf32>
    %c0_26 = arith.constant 0 : index
    %c0_27 = arith.constant 0 : index
    %c3_28 = arith.constant 3 : index
    %c0_29 = arith.constant 0 : index
    %c0_30 = arith.constant 0 : index
    %47 = vector.load %arg8[%c0_26, %c0_27, %c3_28, %c0_29, %c0_30] : memref<1x4x4x8x128xf32, #tpu.memory_space<vmem>>, vector<1x1x1x8x128xf32>
    %48 = vector.shape_cast %47 : vector<1x1x1x8x128xf32> to vector<8x128xf32>
    %49 = vector.shape_cast %46 : vector<8x128xf32> to vector<1x1x1x8x128xf32>
    tpu.vector_store %arg8[%c0_26, %c0_27, %c3_28, %c0_29, %c0_30], %49 {strides = array<i32>} : memref<1x4x4x8x128xf32, #tpu.memory_space<vmem>>, vector<1x1x1x8x128xf32>,
    %cst_31 = arith.constant 0.000000e+00 : f32
    %50 = vector.broadcast %cst_31 : f32 to vector<8x128xf32>
    %51 = arith.cmpf oge, %21, %50 : vector<8x128xf32>
    %cst_32 = arith.constant 1.000000e+00 : f32
    %52 = vector.broadcast %cst_32 : f32 to vector<8x128xf32>
    %53 = arith.select %51, %52, %25 : vector<8x128xi1>, vector<8x128xf32>
    %cst_33 = arith.constant 1.000000e+00 : f32
    %54 = vector.broadcast %cst_33 : f32 to vector<8x128xf32>
    %55 = arith.addf %54, %25 : vector<8x128xf32>
    %56 = arith.divf %53, %55 : vector<8x128xf32>
    %cst_34 = arith.constant 0.000000e+00 : f32
    %57 = vector.broadcast %cst_34 : f32 to vector<8x128xf32>
    %58 = arith.select %14, %56, %57 : vector<8x128xi1>, vector<8x128xf32>
    %c0_35 = arith.constant 0 : index
    %c0_36 = arith.constant 0 : index
    %c1 = arith.constant 1 : index
    %c0_37 = arith.constant 0 : index
    %c0_38 = arith.constant 0 : index
    %59 = vector.load %arg8[%c0_35, %c0_36, %c1, %c0_37, %c0_38] : memref<1x4x4x8x128xf32, #tpu.memory_space<vmem>>, vector<1x1x1x8x128xf32>
    %60 = vector.shape_cast %59 : vector<1x1x1x8x128xf32> to vector<8x128xf32>
    %61 = vector.shape_cast %58 : vector<8x128xf32> to vector<1x8x128xf32>
    %cst_39 = arith.constant dense<0.000000e+00> : vector<8x128xf32>
    %62 = vector.multi_reduction <add>, %61, %cst_39 [0] : vector<1x8x128xf32> to vector<8x128xf32>
    %63 = arith.addf %60, %62 : vector<8x128xf32>
    %c0_40 = arith.constant 0 : index
    %c0_41 = arith.constant 0 : index
    %c1_42 = arith.constant 1 : index
    %c0_43 = arith.constant 0 : index
    %c0_44 = arith.constant 0 : index
    %64 = vector.load %arg8[%c0_40, %c0_41, %c1_42, %c0_43, %c0_44] : memref<1x4x4x8x128xf32, #tpu.memory_space<vmem>>, vector<1x1x1x8x128xf32>
    %65 = vector.shape_cast %64 : vector<1x1x1x8x128xf32> to vector<8x128xf32>
    %66 = vector.shape_cast %63 : vector<8x128xf32> to vector<1x1x1x8x128xf32>
    tpu.vector_store %arg8[%c0_40, %c0_41, %c1_42, %c0_43, %c0_44], %66 {strides = array<i32>} : memref<1x4x4x8x128xf32, #tpu.memory_space<vmem>>, vector<1x1x1x8x128xf32>,
    %c0_45 = arith.constant 0 : index
    %c0_46 = arith.constant 0 : index
    %c2 = arith.constant 2 : index
    %c0_47 = arith.constant 0 : index
    %c0_48 = arith.constant 0 : index
    %67 = vector.load %arg8[%c0_45, %c0_46, %c2, %c0_47, %c0_48] : memref<1x4x4x8x128xf32, #tpu.memory_space<vmem>>, vector<1x1x1x8x128xf32>
    %68 = vector.shape_cast %67 : vector<1x1x1x8x128xf32> to vector<8x128xf32>
    %69 = arith.mulf %58, %17 : vector<8x128xf32>
    %70 = vector.shape_cast %69 : vector<8x128xf32> to vector<1x8x128xf32>
    %cst_49 = arith.constant dense<0.000000e+00> : vector<8x128xf32>
    %71 = vector.multi_reduction <add>, %70, %cst_49 [0] : vector<1x8x128xf32> to vector<8x128xf32>
    %72 = arith.addf %68, %71 : vector<8x128xf32>
    %c0_50 = arith.constant 0 : index
    %c0_51 = arith.constant 0 : index
    %c2_52 = arith.constant 2 : index
    %c0_53 = arith.constant 0 : index
    %c0_54 = arith.constant 0 : index
    %73 = vector.load %arg8[%c0_50, %c0_51, %c2_52, %c0_53, %c0_54] : memref<1x4x4x8x128xf32, #tpu.memory_space<vmem>>, vector<1x1x1x8x128xf32>
    %74 = vector.shape_cast %73 : vector<1x1x1x8x128xf32> to vector<8x128xf32>
    %75 = vector.shape_cast %72 : vector<8x128xf32> to vector<1x1x1x8x128xf32>
    tpu.vector_store %arg8[%c0_50, %c0_51, %c2_52, %c0_53, %c0_54], %75 {strides = array<i32>} : memref<1x4x4x8x128xf32, #tpu.memory_space<vmem>>, vector<1x1x1x8x128xf32>,
    %c0_55 = arith.constant 0 : index
    %c0_56 = arith.constant 0 : index
    %76 = vector.load %arg3[%c0_55, %c0_56] : memref<8x128xf32, #tpu.memory_space<vmem>>, vector<8x128xf32>
    %77 = math.absf %76 : vector<8x128xf32>
    %cst_57 = arith.constant 0.000000e+00 : f32
    %78 = vector.broadcast %cst_57 : f32 to vector<8x128xf32>
    %79 = arith.subf %78, %77 : vector<8x128xf32>
    %80 = math.exp %79 : vector<8x128xf32>
    %cst_58 = arith.constant 0.000000e+00 : f32
    %81 = vector.broadcast %cst_58 : f32 to vector<8x128xf32>
    %82 = arith.maximumf %76, %81 : vector<8x128xf32>
    %83 = arith.mulf %76, %17 : vector<8x128xf32>
    %84 = arith.subf %82, %83 : vector<8x128xf32>
    %85 = math.log1p %80 : vector<8x128xf32>
    %86 = arith.addf %84, %85 : vector<8x128xf32>
    %c0_59 = arith.constant 0 : index
    %c1_60 = arith.constant 1 : index
    %c0_61 = arith.constant 0 : index
    %c0_62 = arith.constant 0 : index
    %c0_63 = arith.constant 0 : index
    %87 = vector.load %arg8[%c0_59, %c1_60, %c0_61, %c0_62, %c0_63] : memref<1x4x4x8x128xf32, #tpu.memory_space<vmem>>, vector<1x1x1x8x128xf32>
    %88 = vector.shape_cast %87 : vector<1x1x1x8x128xf32> to vector<8x128xf32>
    %cst_64 = arith.constant 0.000000e+00 : f32
    %89 = vector.broadcast %cst_64 : f32 to vector<8x128xf32>
    %90 = arith.select %14, %86, %89 : vector<8x128xi1>, vector<8x128xf32>
    %91 = vector.shape_cast %90 : vector<8x128xf32> to vector<1x8x128xf32>
    %cst_65 = arith.constant dense<0.000000e+00> : vector<8x128xf32>
    %92 = vector.multi_reduction <add>, %91, %cst_65 [0] : vector<1x8x128xf32> to vector<8x128xf32>
    %93 = arith.addf %88, %92 : vector<8x128xf32>
    %c0_66 = arith.constant 0 : index
    %c1_67 = arith.constant 1 : index
    %c0_68 = arith.constant 0 : index
    %c0_69 = arith.constant 0 : index
    %c0_70 = arith.constant 0 : index
    %94 = vector.load %arg8[%c0_66, %c1_67, %c0_68, %c0_69, %c0_70] : memref<1x4x4x8x128xf32, #tpu.memory_space<vmem>>, vector<1x1x1x8x128xf32>
    %95 = vector.shape_cast %94 : vector<1x1x1x8x128xf32> to vector<8x128xf32>
    %96 = vector.shape_cast %93 : vector<8x128xf32> to vector<1x1x1x8x128xf32>
    tpu.vector_store %arg8[%c0_66, %c1_67, %c0_68, %c0_69, %c0_70], %96 {strides = array<i32>} : memref<1x4x4x8x128xf32, #tpu.memory_space<vmem>>, vector<1x1x1x8x128xf32>,
    %c0_71 = arith.constant 0 : index
    %c1_72 = arith.constant 1 : index
    %c3_73 = arith.constant 3 : index
    %c0_74 = arith.constant 0 : index
    %c0_75 = arith.constant 0 : index
    %97 = vector.load %arg8[%c0_71, %c1_72, %c3_73, %c0_74, %c0_75] : memref<1x4x4x8x128xf32, #tpu.memory_space<vmem>>, vector<1x1x1x8x128xf32>
    %98 = vector.shape_cast %97 : vector<1x1x1x8x128xf32> to vector<8x128xf32>
    %99 = vector.shape_cast %17 : vector<8x128xf32> to vector<1x8x128xf32>
    %cst_76 = arith.constant dense<0.000000e+00> : vector<8x128xf32>
    %100 = vector.multi_reduction <add>, %99, %cst_76 [0] : vector<1x8x128xf32> to vector<8x128xf32>
    %101 = arith.addf %98, %100 : vector<8x128xf32>
    %c0_77 = arith.constant 0 : index
    %c1_78 = arith.constant 1 : index
    %c3_79 = arith.constant 3 : index
    %c0_80 = arith.constant 0 : index
    %c0_81 = arith.constant 0 : index
    %102 = vector.load %arg8[%c0_77, %c1_78, %c3_79, %c0_80, %c0_81] : memref<1x4x4x8x128xf32, #tpu.memory_space<vmem>>, vector<1x1x1x8x128xf32>
    %103 = vector.shape_cast %102 : vector<1x1x1x8x128xf32> to vector<8x128xf32>
    %104 = vector.shape_cast %101 : vector<8x128xf32> to vector<1x1x1x8x128xf32>
    tpu.vector_store %arg8[%c0_77, %c1_78, %c3_79, %c0_80, %c0_81], %104 {strides = array<i32>} : memref<1x4x4x8x128xf32, #tpu.memory_space<vmem>>, vector<1x1x1x8x128xf32>,
    %cst_82 = arith.constant 0.000000e+00 : f32
    %105 = vector.broadcast %cst_82 : f32 to vector<8x128xf32>
    %106 = arith.cmpf oge, %76, %105 : vector<8x128xf32>
    %cst_83 = arith.constant 1.000000e+00 : f32
    %107 = vector.broadcast %cst_83 : f32 to vector<8x128xf32>
    %108 = arith.select %106, %107, %80 : vector<8x128xi1>, vector<8x128xf32>
    %cst_84 = arith.constant 1.000000e+00 : f32
    %109 = vector.broadcast %cst_84 : f32 to vector<8x128xf32>
    %110 = arith.addf %109, %80 : vector<8x128xf32>
    %111 = arith.divf %108, %110 : vector<8x128xf32>
    %cst_85 = arith.constant 0.000000e+00 : f32
    %112 = vector.broadcast %cst_85 : f32 to vector<8x128xf32>
    %113 = arith.select %14, %111, %112 : vector<8x128xi1>, vector<8x128xf32>
    %c0_86 = arith.constant 0 : index
    %c1_87 = arith.constant 1 : index
    %c1_88 = arith.constant 1 : index
    %c0_89 = arith.constant 0 : index
    %c0_90 = arith.constant 0 : index
    %114 = vector.load %arg8[%c0_86, %c1_87, %c1_88, %c0_89, %c0_90] : memref<1x4x4x8x128xf32, #tpu.memory_space<vmem>>, vector<1x1x1x8x128xf32>
    %115 = vector.shape_cast %114 : vector<1x1x1x8x128xf32> to vector<8x128xf32>
    %116 = vector.shape_cast %113 : vector<8x128xf32> to vector<1x8x128xf32>
    %cst_91 = arith.constant dense<0.000000e+00> : vector<8x128xf32>
    %117 = vector.multi_reduction <add>, %116, %cst_91 [0] : vector<1x8x128xf32> to vector<8x128xf32>
    %118 = arith.addf %115, %117 : vector<8x128xf32>
    %c0_92 = arith.constant 0 : index
    %c1_93 = arith.constant 1 : index
    %c1_94 = arith.constant 1 : index
    %c0_95 = arith.constant 0 : index
    %c0_96 = arith.constant 0 : index
    %119 = vector.load %arg8[%c0_92, %c1_93, %c1_94, %c0_95, %c0_96] : memref<1x4x4x8x128xf32, #tpu.memory_space<vmem>>, vector<1x1x1x8x128xf32>
    %120 = vector.shape_cast %119 : vector<1x1x1x8x128xf32> to vector<8x128xf32>
    %121 = vector.shape_cast %118 : vector<8x128xf32> to vector<1x1x1x8x128xf32>
    tpu.vector_store %arg8[%c0_92, %c1_93, %c1_94, %c0_95, %c0_96], %121 {strides = array<i32>} : memref<1x4x4x8x128xf32, #tpu.memory_space<vmem>>, vector<1x1x1x8x128xf32>,
    %c0_97 = arith.constant 0 : index
    %c1_98 = arith.constant 1 : index
    %c2_99 = arith.constant 2 : index
    %c0_100 = arith.constant 0 : index
    %c0_101 = arith.constant 0 : index
    %122 = vector.load %arg8[%c0_97, %c1_98, %c2_99, %c0_100, %c0_101] : memref<1x4x4x8x128xf32, #tpu.memory_space<vmem>>, vector<1x1x1x8x128xf32>
    %123 = vector.shape_cast %122 : vector<1x1x1x8x128xf32> to vector<8x128xf32>
    %124 = arith.mulf %113, %17 : vector<8x128xf32>
    %125 = vector.shape_cast %124 : vector<8x128xf32> to vector<1x8x128xf32>
    %cst_102 = arith.constant dense<0.000000e+00> : vector<8x128xf32>
    %126 = vector.multi_reduction <add>, %125, %cst_102 [0] : vector<1x8x128xf32> to vector<8x128xf32>
    %127 = arith.addf %123, %126 : vector<8x128xf32>
    %c0_103 = arith.constant 0 : index
    %c1_104 = arith.constant 1 : index
    %c2_105 = arith.constant 2 : index
    %c0_106 = arith.constant 0 : index
    %c0_107 = arith.constant 0 : index
    %128 = vector.load %arg8[%c0_103, %c1_104, %c2_105, %c0_106, %c0_107] : memref<1x4x4x8x128xf32, #tpu.memory_space<vmem>>, vector<1x1x1x8x128xf32>
    %129 = vector.shape_cast %128 : vector<1x1x1x8x128xf32> to vector<8x128xf32>
    %130 = vector.shape_cast %127 : vector<8x128xf32> to vector<1x1x1x8x128xf32>
    tpu.vector_store %arg8[%c0_103, %c1_104, %c2_105, %c0_106, %c0_107], %130 {strides = array<i32>} : memref<1x4x4x8x128xf32, #tpu.memory_space<vmem>>, vector<1x1x1x8x128xf32>,
    %c0_108 = arith.constant 0 : index
    %c0_109 = arith.constant 0 : index
    %131 = vector.load %arg4[%c0_108, %c0_109] : memref<8x128xf32, #tpu.memory_space<vmem>>, vector<8x128xf32>
    %132 = math.absf %131 : vector<8x128xf32>
    %cst_110 = arith.constant 0.000000e+00 : f32
    %133 = vector.broadcast %cst_110 : f32 to vector<8x128xf32>
    %134 = arith.subf %133, %132 : vector<8x128xf32>
    %135 = math.exp %134 : vector<8x128xf32>
    %cst_111 = arith.constant 0.000000e+00 : f32
    %136 = vector.broadcast %cst_111 : f32 to vector<8x128xf32>
    %137 = arith.maximumf %131, %136 : vector<8x128xf32>
    %138 = arith.mulf %131, %20 : vector<8x128xf32>
    %139 = arith.subf %137, %138 : vector<8x128xf32>
    %140 = math.log1p %135 : vector<8x128xf32>
    %141 = arith.addf %139, %140 : vector<8x128xf32>
    %c0_112 = arith.constant 0 : index
    %c2_113 = arith.constant 2 : index
    %c0_114 = arith.constant 0 : index
    %c0_115 = arith.constant 0 : index
    %c0_116 = arith.constant 0 : index
    %142 = vector.load %arg8[%c0_112, %c2_113, %c0_114, %c0_115, %c0_116] : memref<1x4x4x8x128xf32, #tpu.memory_space<vmem>>, vector<1x1x1x8x128xf32>
    %143 = vector.shape_cast %142 : vector<1x1x1x8x128xf32> to vector<8x128xf32>
    %cst_117 = arith.constant 0.000000e+00 : f32
    %144 = vector.broadcast %cst_117 : f32 to vector<8x128xf32>
    %145 = arith.select %14, %141, %144 : vector<8x128xi1>, vector<8x128xf32>
    %146 = vector.shape_cast %145 : vector<8x128xf32> to vector<1x8x128xf32>
    %cst_118 = arith.constant dense<0.000000e+00> : vector<8x128xf32>
    %147 = vector.multi_reduction <add>, %146, %cst_118 [0] : vector<1x8x128xf32> to vector<8x128xf32>
    %148 = arith.addf %143, %147 : vector<8x128xf32>
    %c0_119 = arith.constant 0 : index
    %c2_120 = arith.constant 2 : index
    %c0_121 = arith.constant 0 : index
    %c0_122 = arith.constant 0 : index
    %c0_123 = arith.constant 0 : index
    %149 = vector.load %arg8[%c0_119, %c2_120, %c0_121, %c0_122, %c0_123] : memref<1x4x4x8x128xf32, #tpu.memory_space<vmem>>, vector<1x1x1x8x128xf32>
    %150 = vector.shape_cast %149 : vector<1x1x1x8x128xf32> to vector<8x128xf32>
    %151 = vector.shape_cast %148 : vector<8x128xf32> to vector<1x1x1x8x128xf32>
    tpu.vector_store %arg8[%c0_119, %c2_120, %c0_121, %c0_122, %c0_123], %151 {strides = array<i32>} : memref<1x4x4x8x128xf32, #tpu.memory_space<vmem>>, vector<1x1x1x8x128xf32>,
    %c0_124 = arith.constant 0 : index
    %c2_125 = arith.constant 2 : index
    %c3_126 = arith.constant 3 : index
    %c0_127 = arith.constant 0 : index
    %c0_128 = arith.constant 0 : index
    %152 = vector.load %arg8[%c0_124, %c2_125, %c3_126, %c0_127, %c0_128] : memref<1x4x4x8x128xf32, #tpu.memory_space<vmem>>, vector<1x1x1x8x128xf32>
    %153 = vector.shape_cast %152 : vector<1x1x1x8x128xf32> to vector<8x128xf32>
    %154 = vector.shape_cast %20 : vector<8x128xf32> to vector<1x8x128xf32>
    %cst_129 = arith.constant dense<0.000000e+00> : vector<8x128xf32>
    %155 = vector.multi_reduction <add>, %154, %cst_129 [0] : vector<1x8x128xf32> to vector<8x128xf32>
    %156 = arith.addf %153, %155 : vector<8x128xf32>
    %c0_130 = arith.constant 0 : index
    %c2_131 = arith.constant 2 : index
    %c3_132 = arith.constant 3 : index
    %c0_133 = arith.constant 0 : index
    %c0_134 = arith.constant 0 : index
    %157 = vector.load %arg8[%c0_130, %c2_131, %c3_132, %c0_133, %c0_134] : memref<1x4x4x8x128xf32, #tpu.memory_space<vmem>>, vector<1x1x1x8x128xf32>
    %158 = vector.shape_cast %157 : vector<1x1x1x8x128xf32> to vector<8x128xf32>
    %159 = vector.shape_cast %156 : vector<8x128xf32> to vector<1x1x1x8x128xf32>
    tpu.vector_store %arg8[%c0_130, %c2_131, %c3_132, %c0_133, %c0_134], %159 {strides = array<i32>} : memref<1x4x4x8x128xf32, #tpu.memory_space<vmem>>, vector<1x1x1x8x128xf32>,
    %c0_135 = arith.constant 0 : index
    %c0_136 = arith.constant 0 : index
    %160 = vector.load %arg5[%c0_135, %c0_136] : memref<8x128xf32, #tpu.memory_space<vmem>>, vector<8x128xf32>
    %161 = math.absf %160 : vector<8x128xf32>
    %cst_137 = arith.constant 0.000000e+00 : f32
    %162 = vector.broadcast %cst_137 : f32 to vector<8x128xf32>
    %163 = arith.subf %162, %161 : vector<8x128xf32>
    %164 = math.exp %163 : vector<8x128xf32>
    %cst_138 = arith.constant 0.000000e+00 : f32
    %165 = vector.broadcast %cst_138 : f32 to vector<8x128xf32>
    %166 = arith.maximumf %160, %165 : vector<8x128xf32>
    %167 = arith.mulf %160, %17 : vector<8x128xf32>
    %168 = arith.subf %166, %167 : vector<8x128xf32>
    %169 = math.log1p %164 : vector<8x128xf32>
    %170 = arith.addf %168, %169 : vector<8x128xf32>
    %c0_139 = arith.constant 0 : index
    %c3_140 = arith.constant 3 : index
    %c0_141 = arith.constant 0 : index
    %c0_142 = arith.constant 0 : index
    %c0_143 = arith.constant 0 : index
    %171 = vector.load %arg8[%c0_139, %c3_140, %c0_141, %c0_142, %c0_143] : memref<1x4x4x8x128xf32, #tpu.memory_space<vmem>>, vector<1x1x1x8x128xf32>
    %172 = vector.shape_cast %171 : vector<1x1x1x8x128xf32> to vector<8x128xf32>
    %cst_144 = arith.constant 0.000000e+00 : f32
    %173 = vector.broadcast %cst_144 : f32 to vector<8x128xf32>
    %174 = arith.select %14, %170, %173 : vector<8x128xi1>, vector<8x128xf32>
    %175 = vector.shape_cast %174 : vector<8x128xf32> to vector<1x8x128xf32>
    %cst_145 = arith.constant dense<0.000000e+00> : vector<8x128xf32>
    %176 = vector.multi_reduction <add>, %175, %cst_145 [0] : vector<1x8x128xf32> to vector<8x128xf32>
    %177 = arith.addf %172, %176 : vector<8x128xf32>
    %c0_146 = arith.constant 0 : index
    %c3_147 = arith.constant 3 : index
    %c0_148 = arith.constant 0 : index
    %c0_149 = arith.constant 0 : index
    %c0_150 = arith.constant 0 : index
    %178 = vector.load %arg8[%c0_146, %c3_147, %c0_148, %c0_149, %c0_150] : memref<1x4x4x8x128xf32, #tpu.memory_space<vmem>>, vector<1x1x1x8x128xf32>
    %179 = vector.shape_cast %178 : vector<1x1x1x8x128xf32> to vector<8x128xf32>
    %180 = vector.shape_cast %177 : vector<8x128xf32> to vector<1x1x1x8x128xf32>
    tpu.vector_store %arg8[%c0_146, %c3_147, %c0_148, %c0_149, %c0_150], %180 {strides = array<i32>} : memref<1x4x4x8x128xf32, #tpu.memory_space<vmem>>, vector<1x1x1x8x128xf32>,
    %c0_151 = arith.constant 0 : index
    %c3_152 = arith.constant 3 : index
    %c3_153 = arith.constant 3 : index
    %c0_154 = arith.constant 0 : index
    %c0_155 = arith.constant 0 : index
    %181 = vector.load %arg8[%c0_151, %c3_152, %c3_153, %c0_154, %c0_155] : memref<1x4x4x8x128xf32, #tpu.memory_space<vmem>>, vector<1x1x1x8x128xf32>
    %182 = vector.shape_cast %181 : vector<1x1x1x8x128xf32> to vector<8x128xf32>
    %183 = vector.shape_cast %17 : vector<8x128xf32> to vector<1x8x128xf32>
    %cst_156 = arith.constant dense<0.000000e+00> : vector<8x128xf32>
    %184 = vector.multi_reduction <add>, %183, %cst_156 [0] : vector<1x8x128xf32> to vector<8x128xf32>
    %185 = arith.addf %182, %184 : vector<8x128xf32>
    %c0_157 = arith.constant 0 : index
    %c3_158 = arith.constant 3 : index
    %c3_159 = arith.constant 3 : index
    %c0_160 = arith.constant 0 : index
    %c0_161 = arith.constant 0 : index
    %186 = vector.load %arg8[%c0_157, %c3_158, %c3_159, %c0_160, %c0_161] : memref<1x4x4x8x128xf32, #tpu.memory_space<vmem>>, vector<1x1x1x8x128xf32>
    %187 = vector.shape_cast %186 : vector<1x1x1x8x128xf32> to vector<8x128xf32>
    %188 = vector.shape_cast %185 : vector<8x128xf32> to vector<1x1x1x8x128xf32>
    tpu.vector_store %arg8[%c0_157, %c3_158, %c3_159, %c0_160, %c0_161], %188 {strides = array<i32>} : memref<1x4x4x8x128xf32, #tpu.memory_space<vmem>>, vector<1x1x1x8x128xf32>,
    %cst_162 = arith.constant 0.000000e+00 : f32
    %189 = vector.broadcast %cst_162 : f32 to vector<8x128xf32>
    %190 = arith.cmpf oge, %160, %189 : vector<8x128xf32>
    %cst_163 = arith.constant 1.000000e+00 : f32
    %191 = vector.broadcast %cst_163 : f32 to vector<8x128xf32>
    %192 = arith.select %190, %191, %164 : vector<8x128xi1>, vector<8x128xf32>
    %cst_164 = arith.constant 1.000000e+00 : f32
    %193 = vector.broadcast %cst_164 : f32 to vector<8x128xf32>
    %194 = arith.addf %193, %164 : vector<8x128xf32>
    %195 = arith.divf %192, %194 : vector<8x128xf32>
    %cst_165 = arith.constant 0.000000e+00 : f32
    %196 = vector.broadcast %cst_165 : f32 to vector<8x128xf32>
    %197 = arith.select %14, %195, %196 : vector<8x128xi1>, vector<8x128xf32>
    %c0_166 = arith.constant 0 : index
    %c3_167 = arith.constant 3 : index
    %c1_168 = arith.constant 1 : index
    %c0_169 = arith.constant 0 : index
    %c0_170 = arith.constant 0 : index
    %198 = vector.load %arg8[%c0_166, %c3_167, %c1_168, %c0_169, %c0_170] : memref<1x4x4x8x128xf32, #tpu.memory_space<vmem>>, vector<1x1x1x8x128xf32>
    %199 = vector.shape_cast %198 : vector<1x1x1x8x128xf32> to vector<8x128xf32>
    %200 = vector.shape_cast %197 : vector<8x128xf32> to vector<1x8x128xf32>
    %cst_171 = arith.constant dense<0.000000e+00> : vector<8x128xf32>
    %201 = vector.multi_reduction <add>, %200, %cst_171 [0] : vector<1x8x128xf32> to vector<8x128xf32>
    %202 = arith.addf %199, %201 : vector<8x128xf32>
    %c0_172 = arith.constant 0 : index
    %c3_173 = arith.constant 3 : index
    %c1_174 = arith.constant 1 : index
    %c0_175 = arith.constant 0 : index
    %c0_176 = arith.constant 0 : index
    %203 = vector.load %arg8[%c0_172, %c3_173, %c1_174, %c0_175, %c0_176] : memref<1x4x4x8x128xf32, #tpu.memory_space<vmem>>, vector<1x1x1x8x128xf32>
    %204 = vector.shape_cast %203 : vector<1x1x1x8x128xf32> to vector<8x128xf32>
    %205 = vector.shape_cast %202 : vector<8x128xf32> to vector<1x1x1x8x128xf32>
    tpu.vector_store %arg8[%c0_172, %c3_173, %c1_174, %c0_175, %c0_176], %205 {strides = array<i32>} : memref<1x4x4x8x128xf32, #tpu.memory_space<vmem>>, vector<1x1x1x8x128xf32>,
    %c0_177 = arith.constant 0 : index
    %c3_178 = arith.constant 3 : index
    %c2_179 = arith.constant 2 : index
    %c0_180 = arith.constant 0 : index
    %c0_181 = arith.constant 0 : index
    %206 = vector.load %arg8[%c0_177, %c3_178, %c2_179, %c0_180, %c0_181] : memref<1x4x4x8x128xf32, #tpu.memory_space<vmem>>, vector<1x1x1x8x128xf32>
    %207 = vector.shape_cast %206 : vector<1x1x1x8x128xf32> to vector<8x128xf32>
    %208 = arith.mulf %197, %17 : vector<8x128xf32>
    %209 = vector.shape_cast %208 : vector<8x128xf32> to vector<1x8x128xf32>
    %cst_182 = arith.constant dense<0.000000e+00> : vector<8x128xf32>
    %210 = vector.multi_reduction <add>, %209, %cst_182 [0] : vector<1x8x128xf32> to vector<8x128xf32>
    %211 = arith.addf %207, %210 : vector<8x128xf32>
    %c0_183 = arith.constant 0 : index
    %c3_184 = arith.constant 3 : index
    %c2_185 = arith.constant 2 : index
    %c0_186 = arith.constant 0 : index
    %c0_187 = arith.constant 0 : index
    %212 = vector.load %arg8[%c0_183, %c3_184, %c2_185, %c0_186, %c0_187] : memref<1x4x4x8x128xf32, #tpu.memory_space<vmem>>, vector<1x1x1x8x128xf32>
    %213 = vector.shape_cast %212 : vector<1x1x1x8x128xf32> to vector<8x128xf32>
    %214 = vector.shape_cast %211 : vector<8x128xf32> to vector<1x1x1x8x128xf32>
    tpu.vector_store %arg8[%c0_183, %c3_184, %c2_185, %c0_186, %c0_187], %214 {strides = array<i32>} : memref<1x4x4x8x128xf32, #tpu.memory_space<vmem>>, vector<1x1x1x8x128xf32>,
    return
  }
  func.func @transform_0(%arg0: i32, %arg1: i32) -> (i32, i32) {
    %c1_i32 = arith.constant 1 : i32
    %0 = arith.muli %arg0, %c1_i32 : i32
    %1 = arith.addi %0, %arg1 : i32
    %c0_i32 = arith.constant 0 : i32
    %2 = arith.minsi %1, %c0_i32 : i32
    %c0_i32_0 = arith.constant 0 : i32
    %c0_i32_1 = arith.constant 0 : i32
    return %2, %c0_i32_0 : i32, i32
  }
  func.func @transform_1(%arg0: i32, %arg1: i32) -> (i32, i32) {
    %c1_i32 = arith.constant 1 : i32
    %0 = arith.muli %arg0, %c1_i32 : i32
    %1 = arith.addi %0, %arg1 : i32
    %c0_i32 = arith.constant 0 : i32
    %2 = arith.minsi %1, %c0_i32 : i32
    %c0_i32_0 = arith.constant 0 : i32
    %c0_i32_1 = arith.constant 0 : i32
    return %2, %c0_i32_0 : i32, i32
  }
  func.func @transform_2(%arg0: i32, %arg1: i32) -> (i32, i32) {
    %c1_i32 = arith.constant 1 : i32
    %0 = arith.muli %arg0, %c1_i32 : i32
    %1 = arith.addi %0, %arg1 : i32
    %c0_i32 = arith.constant 0 : i32
    %2 = arith.minsi %1, %c0_i32 : i32
    %c0_i32_0 = arith.constant 0 : i32
    %c0_i32_1 = arith.constant 0 : i32
    return %2, %c0_i32_0 : i32, i32
  }
  func.func @transform_3(%arg0: i32, %arg1: i32) -> (i32, i32) {
    %c1_i32 = arith.constant 1 : i32
    %0 = arith.muli %arg0, %c1_i32 : i32
    %1 = arith.addi %0, %arg1 : i32
    %c0_i32 = arith.constant 0 : i32
    %2 = arith.minsi %1, %c0_i32 : i32
    %c0_i32_0 = arith.constant 0 : i32
    %c0_i32_1 = arith.constant 0 : i32
    return %2, %c0_i32_0 : i32, i32
  }
  func.func @transform_4(%arg0: i32, %arg1: i32) -> (i32, i32) {
    %c1_i32 = arith.constant 1 : i32
    %0 = arith.muli %arg0, %c1_i32 : i32
    %1 = arith.addi %0, %arg1 : i32
    %c0_i32 = arith.constant 0 : i32
    %2 = arith.minsi %1, %c0_i32 : i32
    %c0_i32_0 = arith.constant 0 : i32
    %c0_i32_1 = arith.constant 0 : i32
    return %2, %c0_i32_0 : i32, i32
  }
  func.func @transform_5(%arg0: i32, %arg1: i32) -> (i32, i32) {
    %c1_i32 = arith.constant 1 : i32
    %0 = arith.muli %arg0, %c1_i32 : i32
    %1 = arith.addi %0, %arg1 : i32
    %c0_i32 = arith.constant 0 : i32
    %2 = arith.minsi %1, %c0_i32 : i32
    %c0_i32_0 = arith.constant 0 : i32
    %c0_i32_1 = arith.constant 0 : i32
    return %2, %c0_i32_0 : i32, i32
  }
  func.func @transform_6(%arg0: i32, %arg1: i32) -> (i32, i32, i32, i32, i32) {
    %c0_i32 = arith.constant 0 : i32
    %c0_i32_0 = arith.constant 0 : i32
    %c0_i32_1 = arith.constant 0 : i32
    %c0_i32_2 = arith.constant 0 : i32
    %c0_i32_3 = arith.constant 0 : i32
    return %arg0, %c0_i32, %c0_i32_0, %c0_i32_1, %c0_i32_2 : i32, i32, i32, i32, i32
  }
}

</mosaic_0001>

<llo_original>
// kernel: tpu_custom_call.1
$region0: #{tpu_custom_call.1}
  #allocation0 [shape = 'u32[]', space=smem, size = 0x4, offset = 0x4, fixed_abs, tag = 'smem constant byte address 0x4 - core index']
  #allocation1 [shape = 'u32[144,128]{1,0:T(1,128)}', space=vmem, size = 0x12000, scoped, tag = 'internal scratch']
  %s0 = inlined_call_operand.hbm [shape: f32[8,128], index: 0, kind: input, shape index: {}]
  %s1 = inlined_call_operand.hbm [shape: f32[8,128], index: 1, kind: input, shape index: {}]
  %s2 = inlined_call_operand.hbm [shape: f32[8,128], index: 2, kind: input, shape index: {}]
  %s3 = inlined_call_operand.hbm [shape: f32[8,128], index: 3, kind: input, shape index: {}]
  %s4 = inlined_call_operand.hbm [shape: f32[8,128], index: 4, kind: input, shape index: {}]
  %s5 = inlined_call_operand.vmem [shape: f32[8,128], index: 5, kind: input, shape index: {}]
  %s6 = inlined_call_operand.hbm [shape: f32[1,4,4,8,128], index: 6, kind: output, shape index: {}]
  %s7 = sld [smem:[#allocation0]]
  $region58: #{tpu_custom_call.1} parent=0
    _
  %s9 = ssub.s32 1, %s7
  %s10 = scalar_select 0, %s9, %s7
  $region1: #{tpu_custom_call.1} parent=0
    #allocation2 [shape = 'u8[4096]{0}', space=vmem, size = 0x1000, scoped, tag = 'input window, operand 0, single buffered']
    #allocation3 [shape = 's32[1]{0}', space=sflag, size = 0x4, scoped, tag = 'scoped memory for tpu_custom_call.1']
    #allocation4 [shape = 's32[1]{0}', space=sflag, size = 0x4, scoped, tag = 'scoped memory for tpu_custom_call.1']
    #allocation5 [shape = 'u8[4096]{0}', space=vmem, size = 0x1000, scoped, tag = 'input window, operand 1, single buffered']
    #allocation6 [shape = 's32[1]{0}', space=sflag, size = 0x4, scoped, tag = 'scoped memory for tpu_custom_call.1']
    #allocation7 [shape = 'u8[4096]{0}', space=vmem, size = 0x1000, scoped, tag = 'input window, operand 2, single buffered']
    #allocation8 [shape = 'u8[4096]{0}', space=vmem, size = 0x1000, scoped, tag = 'input window, operand 3, single buffered']
    #allocation9 [shape = 's32[1]{0}', space=sflag, size = 0x4, scoped, tag = 'scoped memory for tpu_custom_call.1']
    #allocation10 [shape = 'u8[4096]{0}', space=vmem, size = 0x1000, scoped, tag = 'input window, operand 4, single buffered']
    #allocation11 [shape = 'u8[65536]{0}', space=vmem, size = 0x10000, scoped, tag = 'output window, operand 0, single buffered']
    %11 = vsyncpa [#allocation3], 0
    %12 = vsyncpa [#allocation6], 0
    %13 = vsyncpa [#allocation9], 0
    %14 = vsyncpa [#allocation4], 0
    // Predicated region
    $region2: #{tpu_custom_call.1} parent=1 // pred_check
      _
    $region3: #{tpu_custom_call.1} parent=1 // pred_check_branch
      %16 = sbr.rel (0) target = $region5
    $region4: #{tpu_custom_call.1} parent=1 // pred_region
      %s17 = sadd.s32 0, 0
      %p18 = scmp.lt.s32.totalorder %s17, 0
      %s19 = scalar_select %p18, %s17, 0
      %s21 = ssub.s32 128, 128
      %22 = vsyncadd [#allocation3], %s21
      %s23 = smul.addr %s19, 128
      %s24 = scalar_lea.hbm %s0, %s23
      %s26 = sshll.u32 [#allocation2], 4
      %s27 = int_to_ptr.vmem [resolvable:$true] %s26
      %29 = dma.hbm_to_vmem [thread:$0]  %s24, 128, %s27, [#allocation3]
    $region5: #{tpu_custom_call.1} parent=1 // pred_fallthru
      _
    // Predicated region
    $region6: #{tpu_custom_call.1} parent=1 // pred_check
      _
    $region7: #{tpu_custom_call.1} parent=1 // pred_check_branch
      %31 = sbr.rel (0) target = $region9
    $region8: #{tpu_custom_call.1} parent=1 // pred_region
      %s32 = sadd.s32 0, 0
      %p33 = scmp.lt.s32.totalorder %s32, 0
      %s34 = scalar_select %p33, %s32, 0
      %s36 = ssub.s32 128, 128
      %37 = vsyncadd [#allocation6], %s36
      %s38 = smul.addr %s34, 128
      %s39 = scalar_lea.hbm %s1, %s38
      %s41 = sshll.u32 [#allocation5], 4
      %s42 = int_to_ptr.vmem [resolvable:$true] %s41
      %44 = dma.hbm_to_vmem [thread:$0]  %s39, 128, %s42, [#allocation6]
    $region9: #{tpu_custom_call.1} parent=1 // pred_fallthru
      _
    // Predicated region
    $region10: #{tpu_custom_call.1} parent=1 // pred_check
      _
    $region11: #{tpu_custom_call.1} parent=1 // pred_check_branch
      %46 = sbr.rel (0) target = $region13
    $region12: #{tpu_custom_call.1} parent=1 // pred_region
      %s47 = sadd.s32 0, 0
      %p48 = scmp.lt.s32.totalorder %s47, 0
      %s49 = scalar_select %p48, %s47, 0
      %s51 = ssub.s32 128, 128
      %52 = vsyncadd [#allocation6], %s51
      %s53 = smul.addr %s49, 128
      %s54 = scalar_lea.hbm %s2, %s53
      %s56 = sshll.u32 [#allocation7], 4
      %s57 = int_to_ptr.vmem [resolvable:$true] %s56
      %59 = dma.hbm_to_vmem [thread:$0]  %s54, 128, %s57, [#allocation6]
    $region13: #{tpu_custom_call.1} parent=1 // pred_fallthru
      _
    // Predicated region
    $region14: #{tpu_custom_call.1} parent=1 // pred_check
      _
    $region15: #{tpu_custom_call.1} parent=1 // pred_check_branch
      %61 = sbr.rel (0) target = $region17
    $region16: #{tpu_custom_call.1} parent=1 // pred_region
      %s62 = sadd.s32 0, 0
      %p63 = scmp.lt.s32.totalorder %s62, 0
      %s64 = scalar_select %p63, %s62, 0
      %s66 = ssub.s32 128, 128
      %67 = vsyncadd [#allocation9], %s66
      %s68 = smul.addr %s64, 128
      %s69 = scalar_lea.hbm %s3, %s68
      %s71 = sshll.u32 [#allocation8], 4
      %s72 = int_to_ptr.vmem [resolvable:$true] %s71
      %74 = dma.hbm_to_vmem [thread:$0]  %s69, 128, %s72, [#allocation9]
    $region17: #{tpu_custom_call.1} parent=1 // pred_fallthru
      _
    // Predicated region
    $region18: #{tpu_custom_call.1} parent=1 // pred_check
      _
    $region19: #{tpu_custom_call.1} parent=1 // pred_check_branch
      %76 = sbr.rel (0) target = $region21
    $region20: #{tpu_custom_call.1} parent=1 // pred_region
      %s77 = sadd.s32 0, 0
      %p78 = scmp.lt.s32.totalorder %s77, 0
      %s79 = scalar_select %p78, %s77, 0
      %s81 = ssub.s32 128, 128
      %82 = vsyncadd [#allocation9], %s81
      %s83 = smul.addr %s79, 128
      %s84 = scalar_lea.hbm %s4, %s83
      %s86 = sshll.u32 [#allocation10], 4
      %s87 = int_to_ptr.vmem [resolvable:$true] %s86
      %89 = dma.hbm_to_vmem [thread:$0]  %s84, 128, %s87, [#allocation9]
    $region21: #{tpu_custom_call.1} parent=1 // pred_fallthru
      _
    // Predicated region
    $region22: #{tpu_custom_call.1} parent=1 // pred_check
      _
    $region23: #{tpu_custom_call.1} parent=1 // pred_check_branch
      %91 = sbr.rel (0) target = $region25
    $region24: #{tpu_custom_call.1} parent=1 // pred_region
      %s92 = sadd.s32 0, 0
      %p93 = scmp.lt.s32.totalorder %s92, 0
      %s94 = scalar_select %p93, %s92, 0
      %p95 = scmp.lt.s32.totalorder %s94, 0
      %s96 = scalar_select %p95, %s94, 0
      %s97 = smul.addr %s96, 8
      %s98 = scalar_lea.vmem %s5, %s97
      %s99 = sadd.s32 0, 0
      %p100 = scmp.lt.s32.totalorder %s99, 0
      %s101 = scalar_select %p100, %s99, 0
    $region25: #{tpu_custom_call.1} parent=1 // pred_fallthru
      _
    // Predicated region
    $region26: #{tpu_custom_call.1} parent=1 // pred_check
      _
    $region27: #{tpu_custom_call.1} parent=1 // pred_check_branch
      %103 = sbr.rel (0) target = $region29
    $region28: #{tpu_custom_call.1} parent=1 // pred_region
      %104 = dma.done [#allocation3], 128
    $region29: #{tpu_custom_call.1} parent=1 // pred_fallthru
      _
    // Predicated region
    $region30: #{tpu_custom_call.1} parent=1 // pred_check
      _
    $region31: #{tpu_custom_call.1} parent=1 // pred_check_branch
      %106 = sbr.rel (0) target = $region33
    $region32: #{tpu_custom_call.1} parent=1 // pred_region
      %107 = dma.done [#allocation6], 128
    $region33: #{tpu_custom_call.1} parent=1 // pred_fallthru
      _
    // Predicated region
    $region34: #{tpu_custom_call.1} parent=1 // pred_check
      _
    $region35: #{tpu_custom_call.1} parent=1 // pred_check_branch
      %109 = sbr.rel (0) target = $region37
    $region36: #{tpu_custom_call.1} parent=1 // pred_region
      %110 = dma.done [#allocation6], 128
    $region37: #{tpu_custom_call.1} parent=1 // pred_fallthru
      _
    // Predicated region
    $region38: #{tpu_custom_call.1} parent=1 // pred_check
      _
    $region39: #{tpu_custom_call.1} parent=1 // pred_check_branch
      %112 = sbr.rel (0) target = $region41
    $region40: #{tpu_custom_call.1} parent=1 // pred_region
      %113 = dma.done [#allocation9], 128
    $region41: #{tpu_custom_call.1} parent=1 // pred_fallthru
      _
    // Predicated region
    $region42: #{tpu_custom_call.1} parent=1 // pred_check
      _
    $region43: #{tpu_custom_call.1} parent=1 // pred_check_branch
      %115 = sbr.rel (0) target = $region45
    $region44: #{tpu_custom_call.1} parent=1 // pred_region
      %116 = dma.done [#allocation9], 128
    $region45: #{tpu_custom_call.1} parent=1 // pred_fallthru
      _
    %s117 = sadd.s32 0, 0
    %p118 = scmp.lt.s32.totalorder %s117, 0
    %s119 = scalar_select %p118, %s117, 0
    %p120 = scmp.lt.s32.totalorder %s119, 0
    %s121 = scalar_select %p120, %s119, 0
    %s122 = smul.addr %s121, 8
    %s123 = scalar_lea.vmem %s5, %s122
    %s124 = sadd.s32 0, 0
    %p125 = scmp.lt.s32.totalorder %s124, 0
    %s126 = scalar_select %p125, %s124, 0
    %s127 = sadd.s32 0, 0
    %p128 = scmp.lt.s32.totalorder %s127, 0
    %s129 = scalar_select %p128, %s127, 0
    %s130 = sadd.s32 0, 0
    %p131 = scmp.lt.s32.totalorder %s130, 0
    %s132 = scalar_select %p131, %s130, 0
    %s133 = sadd.s32 0, 0
    %p134 = scmp.lt.s32.totalorder %s133, 0
    %s135 = scalar_select %p134, %s133, 0
    %s136 = sadd.s32 0, 0
    %p137 = scmp.lt.s32.totalorder %s136, 0
    %s138 = scalar_select %p137, %s136, 0
    %s139 = sadd.s32 0, 0
    %p140 = scmp.lt.s32.totalorder %s139, 0
    %s141 = scalar_select %p140, %s139, 0
    %p142 = scmp.lt.s32.totalorder %s141, 0
    %s143 = scalar_select %p142, %s141, 0
    %s144 = smul.addr %s143, 8
    %s145 = scalar_lea.vmem %s5, %s144
    %s146 = sadd.s32 0, 0
    %p147 = scmp.lt.s32.totalorder %s146, 0
    %s148 = scalar_select %p147, %s146, 0
    %p149 = scmp.eq.s32.totalorder 0, 0
    // Predicated region
    $region46: #{tpu_custom_call.1} parent=1 // pred_check
      %p150 = pneg %p149
    $region47: #{tpu_custom_call.1} parent=1 // pred_check_branch
      %152 = sbr.rel (%p150) target = $region49
    $region48: #{tpu_custom_call.1} parent=1 // pred_region
      %153 = vst [vmem:[#allocation11] sm:$0xff] 0.0
      %154 = vst [vmem:[#allocation11 + $0x8] sm:$0xff] 0.0
      %155 = vst [vmem:[#allocation11 + $0x10] sm:$0xff] 0.0
      %156 = vst [vmem:[#allocation11 + $0x18] sm:$0xff] 0.0
      %157 = vst [vmem:[#allocation11 + $0x20] sm:$0xff] 0.0
      %158 = vst [vmem:[#allocation11 + $0x28] sm:$0xff] 0.0
      %159 = vst [vmem:[#allocation11 + $0x30] sm:$0xff] 0.0
      %160 = vst [vmem:[#allocation11 + $0x38] sm:$0xff] 0.0
      %161 = vst [vmem:[#allocation11 + $0x40] sm:$0xff] 0.0
      %162 = vst [vmem:[#allocation11 + $0x48] sm:$0xff] 0.0
      %163 = vst [vmem:[#allocation11 + $0x50] sm:$0xff] 0.0
      %164 = vst [vmem:[#allocation11 + $0x58] sm:$0xff] 0.0
      %165 = vst [vmem:[#allocation11 + $0x60] sm:$0xff] 0.0
      %166 = vst [vmem:[#allocation11 + $0x68] sm:$0xff] 0.0
      %167 = vst [vmem:[#allocation11 + $0x70] sm:$0xff] 0.0
      %168 = vst [vmem:[#allocation11 + $0x78] sm:$0xff] 0.0
    $region49: #{tpu_custom_call.1} parent=1 // pred_fallthru
      _
    %s169 = sadd.s32 0, 0
    %s170 = smul.u32 %s169, 8
    %v171 = vlaneseq
    %v172 = vshrl.u32 %v171, 7
    %v173 = vlaneseq
    %v174 = vand.u32 %v173, 127
    %v175 = vstv %s170
    %v176 = vadd.s32 %v175, %v172
    %v177 = vmul.u32 %v176, 128
    %v178 = vadd.s32 %v177, %v174
    %vm179 = vcmp.lt.s32.totalorder %v178, 512
    %v180 = vld [vmem:[#allocation10] sm:$0xff]
    %v181 = vsel %vm179, %v180, 0.0
    %v182 = vld [vmem:[%s145] sm:$0xff]
    %v183 = vsel %vm179, %v182, 0.0
    %v184 = vld [vmem:[#allocation2] sm:$0xff]
    %v185 = vand.u32 2147483647, %v184
    %v186 = vsub.f32 0.0, %v185
    %v187 = vmul.f32 %v186, 1.442695
    %v188 = vpow.pop %v187
    %v189 = vmax.f32 %v184, 0.0
    %v190 = vmul.f32 %v184, %v181
    %v191 = vsub.f32 %v189, %v190
    %v192 = vadd.f32 %v188, 1.0
    %v193 = vlog2.pop %v192
    %v194 = vmul.f32 %v193, 0.6931472
    %v195 = vmul.f32 -0.5, %v188
    %v196 = vadd.f32 %v195, 1.0
    %v197 = vmul.f32 %v196, %v188
    %v198 = vand.u32 2147483647, %v188
    %vm199 = vcmp.lt.f32.partialorder %v198, 0.0004427343
    %v200 = vsel %vm199, %v197, %v194
    %v201 = vadd.f32 %v191, %v200
    %v202 = vld [vmem:[#allocation11] sm:$0xff]
    %v203 = vsel %vm179, %v201, 0.0
    %v204 = vadd.f32 %v203, 0.0
    %v205 = vadd.f32 %v202, %v204
    %206 = vst [vmem:[#allocation11] sm:$0xff] %v205
    %s207 = scalar_lea.vmem [#allocation11], 24
    %v208 = vld [vmem:[%s207] sm:$0xff]
    %v209 = vadd.f32 %v181, 0.0
    %v210 = vadd.f32 %v208, %v209
    %211 = vst [vmem:[%s207] sm:$0xff] %v210
    %vm212 = vcmp.ge.f32.partialorder %v184, 0.0
    %v213 = vsel %vm212, 1.0, %v188
    %v214 = vadd.f32 %v188, 1.0
    %v215 = vrcp.pop %v214
    %v216 = vmul.f32 %v213, %v215
    %v217 = vsel %vm179, %v216, 0.0
    %s218 = scalar_lea.vmem [#allocation11], 8
    %v219 = vld [vmem:[%s218] sm:$0xff]
    %v220 = vadd.f32 %v217, 0.0
    %v221 = vadd.f32 %v219, %v220
    %222 = vst [vmem:[%s218] sm:$0xff] %v221
    %s223 = scalar_lea.vmem [#allocation11], 16
    %v224 = vld [vmem:[%s223] sm:$0xff]
    %v225 = vmul.f32 %v217, %v181
    %v226 = vadd.f32 %v225, 0.0
    %v227 = vadd.f32 %v224, %v226
    %228 = vst [vmem:[%s223] sm:$0xff] %v227
    %v229 = vld [vmem:[#allocation5] sm:$0xff]
    %v230 = vand.u32 2147483647, %v229
    %v231 = vsub.f32 0.0, %v230
    %v232 = vmul.f32 %v231, 1.442695
    %v233 = vpow.pop %v232
    %v234 = vmax.f32 %v229, 0.0
    %v235 = vmul.f32 %v229, %v181
    %v236 = vsub.f32 %v234, %v235
    %v237 = vadd.f32 %v233, 1.0
    %v238 = vlog2.pop %v237
    %v239 = vmul.f32 %v238, 0.6931472
    %v240 = vmul.f32 -0.5, %v233
    %v241 = vadd.f32 %v240, 1.0
    %v242 = vmul.f32 %v241, %v233
    %v243 = vand.u32 2147483647, %v233
    %vm244 = vcmp.lt.f32.partialorder %v243, 0.0004427343
    %v245 = vsel %vm244, %v242, %v239
    %v246 = vadd.f32 %v236, %v245
    %s247 = scalar_lea.vmem [#allocation11], 32
    %v248 = vld [vmem:[%s247] sm:$0xff]
    %v249 = vsel %vm179, %v246, 0.0
    %v250 = vadd.f32 %v249, 0.0
    %v251 = vadd.f32 %v248, %v250
    %252 = vst [vmem:[%s247] sm:$0xff] %v251
    %s253 = scalar_lea.vmem [#allocation11], 56
    %v254 = vld [vmem:[%s253] sm:$0xff]
    %v255 = vadd.f32 %v254, %v209
    %256 = vst [vmem:[%s253] sm:$0xff] %v255
    %vm257 = vcmp.ge.f32.partialorder %v229, 0.0
    %v258 = vsel %vm257, 1.0, %v233
    %v259 = vadd.f32 %v233, 1.0
    %v260 = vrcp.pop %v259
    %v261 = vmul.f32 %v258, %v260
    %v262 = vsel %vm179, %v261, 0.0
    %s263 = scalar_lea.vmem [#allocation11], 40
    %v264 = vld [vmem:[%s263] sm:$0xff]
    %v265 = vadd.f32 %v262, 0.0
    %v266 = vadd.f32 %v264, %v265
    %267 = vst [vmem:[%s263] sm:$0xff] %v266
    %s268 = scalar_lea.vmem [#allocation11], 48
    %v269 = vld [vmem:[%s268] sm:$0xff]
    %v270 = vmul.f32 %v262, %v181
    %v271 = vadd.f32 %v270, 0.0
    %v272 = vadd.f32 %v269, %v271
    %273 = vst [vmem:[%s268] sm:$0xff] %v272
    %v274 = vld [vmem:[#allocation7] sm:$0xff]
    %v275 = vand.u32 2147483647, %v274
    %v276 = vsub.f32 0.0, %v275
    %v277 = vmul.f32 %v276, 1.442695
    %v278 = vpow.pop %v277
    %v279 = vmax.f32 %v274, 0.0
    %v280 = vmul.f32 %v274, %v183
    %v281 = vsub.f32 %v279, %v280
    %v282 = vadd.f32 %v278, 1.0
    %v283 = vlog2.pop %v282
    %v284 = vmul.f32 %v283, 0.6931472
    %v285 = vmul.f32 -0.5, %v278
    %v286 = vadd.f32 %v285, 1.0
    %v287 = vmul.f32 %v286, %v278
    %v288 = vand.u32 2147483647, %v278
    %vm289 = vcmp.lt.f32.partialorder %v288, 0.0004427343
    %v290 = vsel %vm289, %v287, %v284
    %v291 = vadd.f32 %v281, %v290
    %s292 = scalar_lea.vmem [#allocation11], 64
    %v293 = vld [vmem:[%s292] sm:$0xff]
    %v294 = vsel %vm179, %v291, 0.0
    %v295 = vadd.f32 %v294, 0.0
    %v296 = vadd.f32 %v293, %v295
    %297 = vst [vmem:[%s292] sm:$0xff] %v296
    %s298 = scalar_lea.vmem [#allocation11], 88
    %v299 = vld [vmem:[%s298] sm:$0xff]
    %v300 = vadd.f32 %v183, 0.0
    %v301 = vadd.f32 %v299, %v300
    %302 = vst [vmem:[%s298] sm:$0xff] %v301
    %v303 = vld [vmem:[#allocation8] sm:$0xff]
    %v304 = vand.u32 2147483647, %v303
    %v305 = vsub.f32 0.0, %v304
    %v306 = vmul.f32 %v305, 1.442695
    %v307 = vpow.pop %v306
    %v308 = vmax.f32 %v303, 0.0
    %v309 = vmul.f32 %v303, %v181
    %v310 = vsub.f32 %v308, %v309
    %v311 = vadd.f32 %v307, 1.0
    %v312 = vlog2.pop %v311
    %v313 = vmul.f32 %v312, 0.6931472
    %v314 = vmul.f32 -0.5, %v307
    %v315 = vadd.f32 %v314, 1.0
    %v316 = vmul.f32 %v315, %v307
    %v317 = vand.u32 2147483647, %v307
    %vm318 = vcmp.lt.f32.partialorder %v317, 0.0004427343
    %v319 = vsel %vm318, %v316, %v313
    %v320 = vadd.f32 %v310, %v319
    %s321 = scalar_lea.vmem [#allocation11], 96
    %v322 = vld [vmem:[%s321] sm:$0xff]
    %v323 = vsel %vm179, %v320, 0.0
    %v324 = vadd.f32 %v323, 0.0
    %v325 = vadd.f32 %v322, %v324
    %326 = vst [vmem:[%s321] sm:$0xff] %v325
    %s327 = scalar_lea.vmem [#allocation11], 120
    %v328 = vld [vmem:[%s327] sm:$0xff]
    %v329 = vadd.f32 %v328, %v209
    %330 = vst [vmem:[%s327] sm:$0xff] %v329
    %vm331 = vcmp.ge.f32.partialorder %v303, 0.0
    %v332 = vsel %vm331, 1.0, %v307
    %v333 = vadd.f32 %v307, 1.0
    %v334 = vrcp.pop %v333
    %v335 = vmul.f32 %v332, %v334
    %v336 = vsel %vm179, %v335, 0.0
    %s337 = scalar_lea.vmem [#allocation11], 104
    %v338 = vld [vmem:[%s337] sm:$0xff]
    %v339 = vadd.f32 %v336, 0.0
    %v340 = vadd.f32 %v338, %v339
    %341 = vst [vmem:[%s337] sm:$0xff] %v340
    %s342 = scalar_lea.vmem [#allocation11], 112
    %v343 = vld [vmem:[%s342] sm:$0xff]
    %v344 = vmul.f32 %v336, %v181
    %v345 = vadd.f32 %v344, 0.0
    %v346 = vadd.f32 %v343, %v345
    %347 = vst [vmem:[%s342] sm:$0xff] %v346
    // Predicated region
    $region50: #{tpu_custom_call.1} parent=1 // pred_check
      _
    $region51: #{tpu_custom_call.1} parent=1 // pred_check_branch
      %349 = sbr.rel (0) target = $region53
    $region52: #{tpu_custom_call.1} parent=1 // pred_region
      %s351 = ssub.s32 2048, 2048
      %352 = vsyncadd [#allocation4], %s351
      %s353 = sshll.u32 [#allocation11], 4
      %s354 = int_to_ptr.vmem [resolvable:$true] %s353
      %359 = dma.vmem_to_hbm [thread:$0]  %s354, 2048, %s6, [#allocation4], 128, 128, 8
    $region53: #{tpu_custom_call.1} parent=1 // pred_fallthru
      _
    // Predicated region
    $region54: #{tpu_custom_call.1} parent=1 // pred_check
      _
    $region55: #{tpu_custom_call.1} parent=1 // pred_check_branch
      %361 = sbr.rel (0) target = $region57
    $region56: #{tpu_custom_call.1} parent=1 // pred_region
      %362 = dma.done [#allocation4], 2048
    $region57: #{tpu_custom_call.1} parent=1 // pred_fallthru
      _
    %363 = vsyncpa [#allocation3], 1
    %364 = vsyncpa [#allocation6], 1
    %365 = vsyncpa [#allocation9], 1
    %366 = vsyncpa [#allocation4], 1

</llo_original>
